<compile_context>
chip_gen: v7x
topology: tpu7x:2x2x1
jax: 0.10.0
libtpu: 0.0.40
codegen_flags: <defaults>
</compile_context>

<pallas_src>
import jax
import jax.numpy as jnp
from jax.experimental import pallas as pl
from jax.experimental.pallas import tpu as pltpu


# ----------------------------------------------------------------------------
# VMEM / tiling heuristics
# ----------------------------------------------------------------------------

_SLACK_BYTES = 4 << 20  # headroom for Mosaic internal scratch / tiny temps


def _vmem_capacity_bytes():
    """Physical VMEM per TensorCore; device-kind-aware fallback."""
    try:
        return int(pltpu.get_tpu_info().vmem_capacity_bytes)
    except Exception:
        pass
    try:
        kind = jax.devices()[0].device_kind.lower()
    except Exception:
        kind = ""
    if "v7" in kind:
        return 64 << 20
    if "v2" in kind or "v3" in kind:
        return 16 << 20
    return 128 << 20  # v4 / v5e / v6e


def _vmem_budget_bytes(cap):
    """Leave ~8 MiB (or 10%) headroom below physical capacity."""
    return min(cap - (8 << 20), (cap * 9) // 10)


def _weight_bytes(c, cr):
    # Double-buffered weight/bias blocks (f32 in-kernel).
    return 2 * 4 * (c * cr + cr + cr * c + c)


def _single_pass_block_bytes(b_blk, per_image_bytes, weight_bytes):
    # 2x input + 2x output blocks (double-buffered) + weights + slack.
    return 4 * b_blk * per_image_bytes + weight_bytes + _SLACK_BYTES


def _choose_batch_block(n, per_image_bytes, weight_bytes, budget_bytes,
                        target_bytes=1 << 20, max_block=8, pref_steps=4):
    """Divisor of n used as the per-step batch block.

    Hard constraints: fits the VMEM budget, <= max_block, and -- whenever n
    allows -- leaves >= 2 grid steps so input/output DMAs overlap with
    compute (and both v7x TensorCores get work on the 'parallel' axis).
    Soft preferences: >= pref_steps grid steps, >= ~1 MiB moved per step.
    """
    cands = [d for d in range(1, n + 1)
             if n % d == 0 and d <= max_block
             and _single_pass_block_bytes(d, per_image_bytes,
                                          weight_bytes) <= budget_bytes]
    if not cands:
        return 1
    multi = [d for d in cands if n // d >= 2]
    if multi:
        cands = multi
        pref = [d for d in cands if n // d >= pref_steps]
        if pref:
            cands = pref
    for d in cands:  # smallest block that still moves >= ~1 MiB per step
        if d * per_image_bytes >= target_bytes:
            return d
    return cands[-1]


def _choose_hw_tile(hw, c, elem_bytes, vmem_cap_bytes):
    """128-lane-aligned spatial tile for the two-pass path.

    ~4 MiB blocks on 128-MiB-VMEM parts (v5e/v6e: amortize the ~0.35 us
    per-step overhead where HBM BW is lowest), ~2 MiB on 64-MiB v7x.
    """
    target = (4 << 20) if vmem_cap_bytes >= (96 << 20) else (2 << 20)
    groups = max(1, target // max(1, c * elem_bytes * 128))
    tile = int(groups) * 128
    return hw if tile >= hw else tile


# ----------------------------------------------------------------------------
# Single-pass kernel: full image(s) per grid step, batched over the block
# ----------------------------------------------------------------------------

def _se_fused_kernel(x_ref, w1t_ref, b1_ref, w2t_ref, b2_ref, o_ref):
    # x_ref / o_ref : (B_blk, C, HW)   C on sublanes, spatial HW on lanes
    # w1t_ref : (C, Cr)  b1_ref : (1, Cr)  w2t_ref : (Cr, C)  b2_ref : (1, C)
    hw = x_ref.shape[-1]
    # Squeeze: one batched lane reduction with f32 accumulation (no full-tile
    # f32 copy of x).
    mean = jnp.sum(x_ref[...], axis=-1,
                   dtype=jnp.float32) * jnp.float32(1.0 / hw)       # (B, C)
    # Excitation: batched over the whole block -> two small MXU matmuls
    # instead of B_blk serial mat-vecs.
    h = jnp.maximum(
        jnp.dot(mean, w1t_ref[...], preferred_element_type=jnp.float32)
        + b1_ref[...], 0.0)                                          # (B, Cr)
    s = jax.nn.sigmoid(
        jnp.dot(h, w2t_ref[...], preferred_element_type=jnp.float32)
        + b2_ref[...])                                               # (B, C)
    # Scale: single broadcast multiply in the INPUT dtype (scale cast once,
    # no f32 round-trip of the big tile).
    o_ref[...] = x_ref[...] * s.astype(o_ref.dtype)[:, :, None]


def _se_single_pass(x, w1t, b1r, w2t, b2r, b_blk, vmem_limit, alias_input):
    n, c, hw = x.shape
    cr = w1t.shape[1]
    extra = {"input_output_aliases": {0: 0}} if alias_input else {}
    return pl.pallas_call(
        _se_fused_kernel,
        out_shape=jax.ShapeDtypeStruct((n, c, hw), x.dtype),
        grid_spec=pltpu.PrefetchScalarGridSpec(
            num_scalar_prefetch=0,
            grid=(n // b_blk,),
            in_specs=[
                pl.BlockSpec((b_blk, c, hw), lambda i: (i, 0, 0)),
                pl.BlockSpec((c, cr), lambda i: (0, 0)),
                pl.BlockSpec((1, cr), lambda i: (0, 0)),
                pl.BlockSpec((cr, c), lambda i: (0, 0)),
                pl.BlockSpec((1, c), lambda i: (0, 0)),
            ],
            out_specs=pl.BlockSpec((b_blk, c, hw), lambda i: (i, 0, 0)),
        ),
        compiler_params=pltpu.CompilerParams(
            dimension_semantics=("parallel",),
            vmem_limit_bytes=vmem_limit),
        **extra,
    )(x, w1t, b1r, w2t, b2r)


# ----------------------------------------------------------------------------
# Two-pass fallback: (1) squeeze+excitation over HW tiles, (2) streaming scale
# ----------------------------------------------------------------------------

def _make_squeeze_kernel(hw, hw_tile):
    needs_mask = (hw % hw_tile) != 0
    inv_hw = 1.0 / hw

    def kernel(x_ref, w1_ref, b1_ref, w2_ref, b2_ref, s_ref, acc_ref):
        # x_ref: (1, C, hw_tile)  s_ref: (1, C, 1) f32  acc_ref: (C, 1) f32
        t = pl.program_id(1)

        @pl.when(t == 0)
        def _():
            acc_ref[...] = jnp.zeros_like(acc_ref)

        x = x_ref[0]                                         # (C, hw_tile)
        if needs_mask:  # last tile may run past HW: zero the OOB lanes
            lane = jax.lax.broadcasted_iota(jnp.int32, x.shape, 1)
            x = jnp.where(t * hw_tile + lane < hw, x, jnp.zeros_like(x))
        acc_ref[...] += jnp.sum(x, axis=-1, keepdims=True,
                                dtype=jnp.float32)           # (C, 1)

        @pl.when(t == pl.num_programs(1) - 1)
        def _():
            mean = acc_ref[...] * jnp.float32(inv_hw)        # (C, 1)
            h = jnp.maximum(
                jnp.dot(w1_ref[...], mean,
                        preferred_element_type=jnp.float32) + b1_ref[...],
                0.0)                                         # (Cr, 1)
            s_ref[0] = jax.nn.sigmoid(
                jnp.dot(w2_ref[...], h,
                        preferred_element_type=jnp.float32) + b2_ref[...])

    return kernel


def _se_scale_kernel(x_ref, s_ref, o_ref):
    # x_ref / o_ref: (1, C, hw_tile)   s_ref: (1, C, 1) f32
    # Multiply in the input dtype; (C, 1) scale lane-broadcasts over HW.
    o_ref[0] = x_ref[0] * s_ref[0].astype(o_ref.dtype)


def _se_two_pass(x, w1, b1c, w2, b2c, hw_tile, vmem_limit, alias_input):
    n, c, hw = x.shape
    cr = w1.shape[0]
    n_t = pl.cdiv(hw, hw_tile)

    # Pass 1: per-image channel scale s = sigmoid(W2 relu(W1 mean + b1) + b2).
    s = pl.pallas_call(
        _make_squeeze_kernel(hw, hw_tile),
        out_shape=jax.ShapeDtypeStruct((n, c, 1), jnp.float32),
        grid_spec=pltpu.PrefetchScalarGridSpec(
            num_scalar_prefetch=0,
            grid=(n, n_t),
            in_specs=[
                pl.BlockSpec((1, c, hw_tile), lambda b, t: (b, 0, t)),
                pl.BlockSpec((cr, c), lambda b, t: (0, 0)),
                pl.BlockSpec((cr, 1), lambda b, t: (0, 0)),
                pl.BlockSpec((c, cr), lambda b, t: (0, 0)),
                pl.BlockSpec((c, 1), lambda b, t: (0, 0)),
            ],
            out_specs=pl.BlockSpec((1, c, 1), lambda b, t: (b, 0, 0)),
            scratch_shapes=[pltpu.VMEM((c, 1), jnp.float32)],
        ),
        compiler_params=pltpu.CompilerParams(
            dimension_semantics=("parallel", "arbitrary"),
            vmem_limit_bytes=vmem_limit),
    )(x, w1, b1c, w2, b2c)

    # Pass 2: streaming elementwise scale, fully parallel over (image, tile).
    extra = {"input_output_aliases": {0: 0}} if alias_input else {}
    return pl.pallas_call(
        _se_scale_kernel,
        out_shape=jax.ShapeDtypeStruct((n, c, hw), x.dtype),
        grid_spec=pltpu.PrefetchScalarGridSpec(
            num_scalar_prefetch=0,
            grid=(n, n_t),
            in_specs=[
                pl.BlockSpec((1, c, hw_tile), lambda b, t: (b, 0, t)),
                pl.BlockSpec((1, c, 1), lambda b, t: (b, 0, 0)),
            ],
            out_specs=pl.BlockSpec((1, c, hw_tile), lambda b, t: (b, 0, t)),
        ),
        compiler_params=pltpu.CompilerParams(
            dimension_semantics=("parallel", "parallel"),
            vmem_limit_bytes=vmem_limit),
        **extra,
    )(x, s)


# ----------------------------------------------------------------------------
# Public wrapper
# ----------------------------------------------------------------------------

def squeeze_and_excitation(x_nchw, w1, b1, w2, b2, *,
                           force_two_pass=False, hw_tile=None,
                           alias_input=False):
    """SE forward in the native NCHW layout.

    x_nchw: (N, C, H, W).
    w1: (Cr, C)  = Conv2d(C, Cr, 1) weight with the 1x1 kernel squeezed.
    b1: (Cr,), w2: (C, Cr) = Conv2d(Cr, C, 1) weight squeezed, b2: (C,).
    alias_input: set True only when x is donated at the jit boundary
    (enables input/output buffer aliasing in both paths).
    """
    n, c, h, w = x_nchw.shape
    cr = w1.shape[0]
    hw = h * w

    # Free reshape (trailing dims): (N,C,H,W) -> (N,C,HW); HW lands on lanes.
    x = x_nchw.reshape(n, c, hw)

    elem = x.dtype.itemsize
    per_image = c * hw * elem
    wbytes = _weight_bytes(c, cr)
    cap = _vmem_capacity_bytes()
    budget = _vmem_budget_bytes(cap)

    single_ok = _single_pass_block_bytes(1, per_image, wbytes) <= budget
    if force_two_pass or not single_ok:
        # Column-form weights: the per-channel scale comes out directly as
        # the (C, 1) needed for the lane-broadcast multiply.
        w1c = w1.astype(jnp.float32)
        w2c = w2.astype(jnp.float32)
        b1c = b1.reshape(cr, 1).astype(jnp.float32)
        b2c = b2.reshape(c, 1).astype(jnp.float32)
        tile = hw_tile if hw_tile is not None else _choose_hw_tile(hw, c,
                                                                   elem, cap)
        out = _se_two_pass(x, w1c, b1c, w2c, b2c, tile, budget, alias_input)
    else:
        # Row-form weights: excitation batched over the image block.
        w1t = w1.T.astype(jnp.float32)                 # (C, Cr)
        w2t = w2.T.astype(jnp.float32)                 # (Cr, C)
        b1r = b1.reshape(1, cr).astype(jnp.float32)
        b2r = b2.reshape(1, c).astype(jnp.float32)
        b_blk = _choose_batch_block(n, per_image, wbytes, budget)
        out = _se_single_pass(x, w1t, b1r, w2t, b2r, b_blk, budget,
                              alias_input)

    return out.reshape(n, c, h, w)


def reference(x_nchw, w1, b1, w2, b2):
    """Pure-JAX reference of the PyTorch forward (conv-layout weights)."""
    mean = jnp.mean(x_nchw, axis=(2, 3))                  # (N, C)
    h = jnp.maximum(mean @ w1.T + b1, 0.0)                # (N, Cr)
    s = jax.nn.sigmoid(h @ w2.T + b2)                     # (N, C)
    return x_nchw * s[:, :, None, None]


if __name__ == "__main__":
    key = jax.random.PRNGKey(0)
    kx1, kx2, k1, k2, k3, k4 = jax.random.split(key, 6)

    n, c, reduction = 2, 32, 16
    cr = c // reduction

    # Conv2d weights with the 1x1 kernel squeezed (PyTorch layout).
    w1 = jax.random.normal(k1, (cr, c), dtype=jnp.float32) * 0.1
    b1 = jax.random.normal(k2, (cr,), dtype=jnp.float32) * 0.1
    w2 = jax.random.normal(k3, (c, cr), dtype=jnp.float32) * 0.1
    b2 = jax.random.normal(k4, (c,), dtype=jnp.float32) * 0.1

    # Case 1: HW = 256 (multiple of 128) -> lane-dense single-pass path
    # (batched squeeze/excitation, >= 2 grid steps for DMA/compute overlap).
    x_a = jax.random.normal(kx1, (n, c, 16, 16), dtype=jnp.float32)
    y_ref = reference(x_a, w1, b1, w2, b2)
    y1 = jax.block_until_ready(squeeze_and_excitation(x_a, w1, b1, w2, b2))
    assert y1.shape == x_a.shape
    assert jnp.allclose(y1, y_ref, atol=1e-5, rtol=1e-5), "single-pass mismatch"

    # Case 2: same input through the two-pass (squeeze + streaming scale)
    # fallback that VMEM-exceeding images would take.
    y2 = jax.block_until_ready(
        squeeze_and_excitation(x_a, w1, b1, w2, b2,
                               force_two_pass=True, hw_tile=128))
    assert jnp.allclose(y2, y_ref, atol=1e-5, rtol=1e-5), "two-pass mismatch"

    # Case 3: HW = 180 is not a multiple of the 128-lane tile -> masked
    # squeeze reduction and OOB-dropped stores in the scale pass.
    x_b = jax.random.normal(kx2, (n, c, 18, 10), dtype=jnp.float32)
    y3 = jax.block_until_ready(
        squeeze_and_excitation(x_b, w1, b1, w2, b2,
                               force_two_pass=True, hw_tile=128))
    assert jnp.allclose(y3, reference(x_b, w1, b1, w2, b2),
                        atol=1e-5, rtol=1e-5), "masked two-pass mismatch"

    print("KERNEL_OK")
</pallas_src>

<mosaic_0001>
module attributes {stable_mosaic.version = 11 : i64} {
  func.func @_se_fused_kernel(%arg0: i32, %arg1: memref<1x32x256xf32, #tpu.memory_space<vmem>>, %arg2: memref<32x2xf32, #tpu.memory_space<vmem>>, %arg3: memref<1x2xf32, #tpu.memory_space<vmem>>, %arg4: memref<2x32xf32, #tpu.memory_space<vmem>>, %arg5: memref<1x32xf32, #tpu.memory_space<vmem>>, %arg6: memref<1x32x256xf32, #tpu.memory_space<vmem>>) attributes {dimension_semantics = [#tpu.dimension_semantics<parallel>], iteration_bounds = array<i64: 2>, scalar_prefetch = 0 : i64, scratch_operands = 0 : i64, tpu.core_type = #tpu.core_type<tc>, window_params = [{transform_indices = @transform_0, window_bounds = array<i64: 1, 32, 256>}, {pipeline_mode = #tpu.pipeline_mode<synchronous>, transform_indices = @transform_1, window_bounds = array<i64: 32, 2>}, {pipeline_mode = #tpu.pipeline_mode<synchronous>, transform_indices = @transform_2, window_bounds = array<i64: 1, 2>}, {pipeline_mode = #tpu.pipeline_mode<synchronous>, transform_indices = @transform_3, window_bounds = array<i64: 2, 32>}, {pipeline_mode = #tpu.pipeline_mode<synchronous>, transform_indices = @transform_4, window_bounds = array<i64: 1, 32>}, {transform_indices = @transform_5, window_bounds = array<i64: 1, 32, 256>}]} {
    %c0 = arith.constant 0 : index
    %c0_0 = arith.constant 0 : index
    %c0_1 = arith.constant 0 : index
    %0 = vector.load %arg1[%c0, %c0_0, %c0_1] : memref<1x32x256xf32, #tpu.memory_space<vmem>>, vector<1x32x256xf32>
    %cst = arith.constant dense<0.000000e+00> : vector<1x32xf32>
    %1 = vector.multi_reduction <add>, %0, %cst [2] : vector<1x32x256xf32> to vector<1x32xf32>
    %cst_2 = arith.constant 3.906250e-03 : f32
    %2 = vector.broadcast %cst_2 : f32 to vector<1x32xf32>
    %3 = arith.mulf %1, %2 : vector<1x32xf32>
    %c0_3 = arith.constant 0 : index
    %c0_4 = arith.constant 0 : index
    %4 = vector.load %arg2[%c0_3, %c0_4] : memref<32x2xf32, #tpu.memory_space<vmem>>, vector<32x2xf32>
    %cst_5 = arith.constant dense<0.000000e+00> : vector<1x2xf32>
    %5 = tpu.matmul %3, %4, %cst_5 {dimension_numbers = #tpu.dot_dimension_numbers<[1], [0], [0], [1], [0, 0, 1, 1], [], []>} : vector<1x32xf32>, vector<32x2xf32>, vector<1x2xf32> -> vector<1x2xf32>
    %c0_6 = arith.constant 0 : index
    %c0_7 = arith.constant 0 : index
    %6 = vector.load %arg3[%c0_6, %c0_7] : memref<1x2xf32, #tpu.memory_space<vmem>>, vector<1x2xf32>
    %7 = arith.addf %5, %6 : vector<1x2xf32>
    %cst_8 = arith.constant 0.000000e+00 : f32
    %8 = vector.broadcast %cst_8 : f32 to vector<1x2xf32>
    %9 = arith.maximumf %7, %8 : vector<1x2xf32>
    %c0_9 = arith.constant 0 : index
    %c0_10 = arith.constant 0 : index
    %10 = vector.load %arg4[%c0_9, %c0_10] : memref<2x32xf32, #tpu.memory_space<vmem>>, vector<2x32xf32>
    %cst_11 = arith.constant dense<0.000000e+00> : vector<1x32xf32>
    %11 = tpu.matmul %9, %10, %cst_11 {dimension_numbers = #tpu.dot_dimension_numbers<[1], [0], [0], [1], [0, 0, 1, 1], [], []>} : vector<1x2xf32>, vector<2x32xf32>, vector<1x32xf32> -> vector<1x32xf32>
    %c0_12 = arith.constant 0 : index
    %c0_13 = arith.constant 0 : index
    %12 = vector.load %arg5[%c0_12, %c0_13] : memref<1x32xf32, #tpu.memory_space<vmem>>, vector<1x32xf32>
    %13 = arith.addf %11, %12 : vector<1x32xf32>
    %14 = arith.negf %13 : vector<1x32xf32>
    %15 = math.exp %14 : vector<1x32xf32>
    %cst_14 = arith.constant 1.000000e+00 : f32
    %16 = vector.broadcast %cst_14 : f32 to vector<1x32xf32>
    %17 = arith.addf %16, %15 : vector<1x32xf32>
    %18 = arith.divf %16, %17 : vector<1x32xf32>
    %c0_15 = arith.constant 0 : index
    %c0_16 = arith.constant 0 : index
    %c0_17 = arith.constant 0 : index
    %19 = vector.load %arg1[%c0_15, %c0_16, %c0_17] : memref<1x32x256xf32, #tpu.memory_space<vmem>>, vector<1x32x256xf32>
    %20 = vector.shape_cast %18 : vector<1x32xf32> to vector<1x32x1xf32>
    %21 = vector.broadcast %20 : vector<1x32x1xf32> to vector<1x32x256xf32>
    %22 = arith.mulf %19, %21 : vector<1x32x256xf32>
    %c0_18 = arith.constant 0 : index
    %c0_19 = arith.constant 0 : index
    %c0_20 = arith.constant 0 : index
    %23 = vector.load %arg6[%c0_18, %c0_19, %c0_20] : memref<1x32x256xf32, #tpu.memory_space<vmem>>, vector<1x32x256xf32>
    tpu.vector_store %arg6[%c0_18, %c0_19, %c0_20], %22 {strides = array<i32>} : memref<1x32x256xf32, #tpu.memory_space<vmem>>, vector<1x32x256xf32>,
    return
  }
  func.func @transform_0(%arg0: i32) -> (i32, i32, i32) {
    %c0_i32 = arith.constant 0 : i32
    %c0_i32_0 = arith.constant 0 : i32
    %c0_i32_1 = arith.constant 0 : i32
    return %arg0, %c0_i32, %c0_i32_0 : i32, i32, i32
  }
  func.func @transform_1(%arg0: i32) -> (i32, i32) {
    %c0_i32 = arith.constant 0 : i32
    %c0_i32_0 = arith.constant 0 : i32
    %c0_i32_1 = arith.constant 0 : i32
    return %c0_i32, %c0_i32_0 : i32, i32
  }
  func.func @transform_2(%arg0: i32) -> (i32, i32) {
    %c0_i32 = arith.constant 0 : i32
    %c0_i32_0 = arith.constant 0 : i32
    %c0_i32_1 = arith.constant 0 : i32
    return %c0_i32, %c0_i32_0 : i32, i32
  }
  func.func @transform_3(%arg0: i32) -> (i32, i32) {
    %c0_i32 = arith.constant 0 : i32
    %c0_i32_0 = arith.constant 0 : i32
    %c0_i32_1 = arith.constant 0 : i32
    return %c0_i32, %c0_i32_0 : i32, i32
  }
  func.func @transform_4(%arg0: i32) -> (i32, i32) {
    %c0_i32 = arith.constant 0 : i32
    %c0_i32_0 = arith.constant 0 : i32
    %c0_i32_1 = arith.constant 0 : i32
    return %c0_i32, %c0_i32_0 : i32, i32
  }
  func.func @transform_5(%arg0: i32) -> (i32, i32, i32) {
    %c0_i32 = arith.constant 0 : i32
    %c0_i32_0 = arith.constant 0 : i32
    %c0_i32_1 = arith.constant 0 : i32
    return %arg0, %c0_i32, %c0_i32_0 : i32, i32, i32
  }
}

</mosaic_0001>

<llo_original>
// kernel: tpu_custom_call.1
$region0: #{tpu_custom_call.1}
  #allocation0 [shape = 'u32[]', space=smem, size = 0x4, offset = 0x4, fixed_abs, tag = 'smem constant byte address 0x4 - core index']
  #allocation1 [shape = 'u32[144,128]{1,0:T(1,128)}', space=vmem, size = 0x12000, scoped, tag = 'internal scratch']
  %s0 = inlined_call_operand.hbm [shape: f32[2,32,256], index: 0, kind: input, shape index: {}]
  %s1 = inlined_call_operand.hbm [shape: f32[32,2], index: 1, kind: input, shape index: {}]
  %s2 = inlined_call_operand.hbm [shape: f32[1,2], index: 2, kind: input, shape index: {}]
  %s3 = inlined_call_operand.hbm [shape: f32[2,32], index: 3, kind: input, shape index: {}]
  %s4 = inlined_call_operand.hbm [shape: f32[1,32], index: 4, kind: input, shape index: {}]
  %s5 = inlined_call_operand.hbm [shape: f32[2,32,256], index: 5, kind: output, shape index: {}]
  %s6 = sld [smem:[#allocation0]]
  $region73: #{tpu_custom_call.1} parent=0
    _
  %s8 = ssub.s32 1, %s6
  %s9 = scalar_select 0, %s8, %s6
  $region1: #{tpu_custom_call.1} parent=0
    #allocation2 [shape = 'u8[65536]{0}', space=vmem, size = 0x10000, scoped, tag = 'input window, operand 0']
    #allocation3 [shape = 's32[2]{0}', space=sflag, size = 0x8, scoped, tag = 'scoped memory for tpu_custom_call.1']
    #allocation4 [shape = 's32[2]{0}', space=sflag, size = 0x8, scoped, tag = 'scoped memory for tpu_custom_call.1']
    #allocation5 [shape = 'u8[16384]{0}', space=vmem, size = 0x4000, scoped, tag = 'input window, operand 1, single buffered']
    #allocation6 [shape = 's32[1]{0}', space=sflag, size = 0x4, scoped, tag = 'scoped memory for tpu_custom_call.1']
    #allocation7 [shape = 'u8[512]{0}', space=vmem, size = 0x400, scoped, tag = 'input window, operand 2, single buffered']
    #allocation8 [shape = 'u8[1024]{0}', space=vmem, size = 0x400, scoped, tag = 'input window, operand 3, single buffered']
    #allocation9 [shape = 's32[1]{0}', space=sflag, size = 0x4, scoped, tag = 'scoped memory for tpu_custom_call.1']
    #allocation10 [shape = 'u8[512]{0}', space=vmem, size = 0x400, scoped, tag = 'input window, operand 4, single buffered']
    #allocation11 [shape = 'u8[65536]{0}', space=vmem, size = 0x10000, scoped, tag = 'output window, operand 0']
    %10 = vsyncpa [#allocation3], 0
    %s11 = scalar_lea.sflag [#allocation3], 1
    %12 = vsyncpa %s11, 0
    %13 = vsyncpa [#allocation6], 0
    %14 = vsyncpa [#allocation9], 0
    %15 = vsyncpa [#allocation4], 0
    %s16 = scalar_lea.sflag [#allocation4], 1
    %17 = vsyncpa %s16, 0
    loop: start=0, step=1, limit=4
    $region2: #{tpu_custom_call.1} parent=1 // loop_pre_header
      _
    $region3: #{tpu_custom_call.1} parent=1 // loop_header
      %s19 = sphi 0, %s23
      %p20 = scmp.ge.s32.totalorder %s19, 4
      %s29 = sphi 0, %s31
      %s32 = sphi 0, %s29
      %s33 = sphi 0, %s32
      %s49 = sphi 0, %s33
      %s53 = sphi 0, %s53
      %s55 = sphi 0, %s53
      %s56 = sphi 0, %s55
      %s70 = sphi 0, %s56
      %s74 = sphi 0, %s74
      %s76 = sphi 0, %s74
      %s77 = sphi 0, %s76
      %s91 = sphi 0, %s77
      %s95 = sphi 0, %s95
      %s97 = sphi 0, %s95
      %s98 = sphi 0, %s97
      %s112 = sphi 0, %s98
      %s116 = sphi 0, %s116
      %s118 = sphi 0, %s116
      %s119 = sphi 0, %s118
      %s133 = sphi 0, %s119
      %s139 = sphi 0, %s141
      %s142 = sphi 0, %s139
      %s143 = sphi 0, %s142
      %s159 = sphi 0, %s143
    $region4: #{tpu_custom_call.1} parent=1 // loop_header_branch
      %22 = sbr.rel (%p20) target = $region8
    $region5: #{tpu_custom_call.1} parent=1 // loop_body
      %s24 = ssub.s32 %s19, 1
      %s25 = ssub.s32 %s19, 2
      %s26 = sadd.s32 %s19, 1
      %s27 = ssub.s32 %s19, %s26
      %p28 = scmp.eq.s32.totalorder %s27, 0
      %s30 = sadd.s32 %s29, 1
      %s31 = scalar_select %p28, %s29, %s30
      %p34 = pneg %p28
      %p35 = scmp.eq.s32.totalorder %s19, 1
      %p36 = por %p34, %p35
      %p37 = scmp.ne.s32.totalorder %s29, %s32
      %p38 = scmp.eq.s32.totalorder %s19, 0
      %p39 = por %p37, %p38
      %p40 = scmp.ne.s32.totalorder %s29, %s32
      %p41 = scmp.eq.s32.totalorder %s24, 1
      %p42 = por %p40, %p41
      %p43 = scmp.ne.s32.totalorder %s32, %s33
      %p44 = scmp.eq.s32.totalorder %s24, 0
      %p45 = por %p43, %p44
      %p46 = scmp.ne.s32.totalorder %s32, %s33
      %p47 = scmp.eq.s32.totalorder %s25, 1
      %p48 = por %p46, %p47
      %p50 = scmp.ne.s32.totalorder %s33, %s49
      %p51 = scmp.eq.s32.totalorder %s25, 0
      %p52 = por %p50, %p51
      %s54 = sadd.s32 %s53, 1
      %p57 = scmp.eq.s32.totalorder %s19, 1
      %p58 = scmp.ne.s32.totalorder %s53, %s55
      %p59 = scmp.eq.s32.totalorder %s19, 0
      %p60 = por %p58, %p59
      %p61 = scmp.ne.s32.totalorder %s53, %s55
      %p62 = scmp.eq.s32.totalorder %s24, 1
      %p63 = por %p61, %p62
      %p64 = scmp.ne.s32.totalorder %s55, %s56
      %p65 = scmp.eq.s32.totalorder %s24, 0
      %p66 = por %p64, %p65
      %p67 = scmp.ne.s32.totalorder %s55, %s56
      %p68 = scmp.eq.s32.totalorder %s25, 1
      %p69 = por %p67, %p68
      %p71 = scmp.ne.s32.totalorder %s56, %s70
      %p72 = scmp.eq.s32.totalorder %s25, 0
      %p73 = por %p71, %p72
      %s75 = sadd.s32 %s74, 1
      %p78 = scmp.eq.s32.totalorder %s19, 1
      %p79 = scmp.ne.s32.totalorder %s74, %s76
      %p80 = scmp.eq.s32.totalorder %s19, 0
      %p81 = por %p79, %p80
      %p82 = scmp.ne.s32.totalorder %s74, %s76
      %p83 = scmp.eq.s32.totalorder %s24, 1
      %p84 = por %p82, %p83
      %p85 = scmp.ne.s32.totalorder %s76, %s77
      %p86 = scmp.eq.s32.totalorder %s24, 0
      %p87 = por %p85, %p86
      %p88 = scmp.ne.s32.totalorder %s76, %s77
      %p89 = scmp.eq.s32.totalorder %s25, 1
      %p90 = por %p88, %p89
      %p92 = scmp.ne.s32.totalorder %s77, %s91
      %p93 = scmp.eq.s32.totalorder %s25, 0
      %p94 = por %p92, %p93
      %s96 = sadd.s32 %s95, 1
      %p99 = scmp.eq.s32.totalorder %s19, 1
      %p100 = scmp.ne.s32.totalorder %s95, %s97
      %p101 = scmp.eq.s32.totalorder %s19, 0
      %p102 = por %p100, %p101
      %p103 = scmp.ne.s32.totalorder %s95, %s97
      %p104 = scmp.eq.s32.totalorder %s24, 1
      %p105 = por %p103, %p104
      %p106 = scmp.ne.s32.totalorder %s97, %s98
      %p107 = scmp.eq.s32.totalorder %s24, 0
      %p108 = por %p106, %p107
      %p109 = scmp.ne.s32.totalorder %s97, %s98
      %p110 = scmp.eq.s32.totalorder %s25, 1
      %p111 = por %p109, %p110
      %p113 = scmp.ne.s32.totalorder %s98, %s112
      %p114 = scmp.eq.s32.totalorder %s25, 0
      %p115 = por %p113, %p114
      %s117 = sadd.s32 %s116, 1
      %p120 = scmp.eq.s32.totalorder %s19, 1
      %p121 = scmp.ne.s32.totalorder %s116, %s118
      %p122 = scmp.eq.s32.totalorder %s19, 0
      %p123 = por %p121, %p122
      %p124 = scmp.ne.s32.totalorder %s116, %s118
      %p125 = scmp.eq.s32.totalorder %s24, 1
      %p126 = por %p124, %p125
      %p127 = scmp.ne.s32.totalorder %s118, %s119
      %p128 = scmp.eq.s32.totalorder %s24, 0
      %p129 = por %p127, %p128
      %p130 = scmp.ne.s32.totalorder %s118, %s119
      %p131 = scmp.eq.s32.totalorder %s25, 1
      %p132 = por %p130, %p131
      %p134 = scmp.ne.s32.totalorder %s119, %s133
      %p135 = scmp.eq.s32.totalorder %s25, 0
      %p136 = por %p134, %p135
      %s137 = ssub.s32 %s19, %s26
      %p138 = scmp.eq.s32.totalorder %s137, 0
      %s140 = sadd.s32 %s139, 1
      %s141 = scalar_select %p138, %s139, %s140
      %p144 = pneg %p138
      %p145 = scmp.eq.s32.totalorder %s19, 1
      %p146 = por %p144, %p145
      %p147 = scmp.ne.s32.totalorder %s139, %s142
      %p148 = scmp.eq.s32.totalorder %s19, 0
      %p149 = por %p147, %p148
      %p150 = scmp.ne.s32.totalorder %s139, %s142
      %p151 = scmp.eq.s32.totalorder %s24, 1
      %p152 = por %p150, %p151
      %p153 = scmp.ne.s32.totalorder %s142, %s143
      %p154 = scmp.eq.s32.totalorder %s24, 0
      %p155 = por %p153, %p154
      %p156 = scmp.ne.s32.totalorder %s142, %s143
      %p157 = scmp.eq.s32.totalorder %s25, 1
      %p158 = por %p156, %p157
      %p160 = scmp.ne.s32.totalorder %s143, %s159
      %p161 = scmp.eq.s32.totalorder %s25, 0
      %p162 = por %p160, %p161
      %p163 = scmp.le.s32.totalorder 1, %s19
      %p164 = scmp.lt.s32.totalorder %s19, 3
      %p165 = pnand %p163, %p164
      %p166 = pneg %p165
      // Predicated region
      $region9: #{tpu_custom_call.1} parent=5 // pred_check
        _
      $region10: #{tpu_custom_call.1} parent=5 // pred_check_branch
        %168 = sbr.rel (%p165) target = $region12
      $region11: #{tpu_custom_call.1} parent=5 // pred_region
        %s169 = ssub.s32 %s19, 1
        // Predicated region
        $region13: #{tpu_custom_call.1} parent=11 // pred_check
          %p170 = pneg %p66
        $region14: #{tpu_custom_call.1} parent=11 // pred_check_branch
          %172 = sbr.rel (%p170) target = $region16
        $region15: #{tpu_custom_call.1} parent=11 // pred_region
          %s174 = ssub.s32 512, 512
          %175 = vsyncadd [#allocation6], %s174
          %s176 = sshll.u32 [#allocation5], 4
          %s177 = int_to_ptr.vmem [resolvable:$true] %s176
          %182 = dma.hbm_to_vmem [thread:$0]  %s1, 512, %s177, [#allocation6], 128, 128, 8
        $region16: #{tpu_custom_call.1} parent=11 // pred_fallthru
          _
        // Predicated region
        $region17: #{tpu_custom_call.1} parent=11 // pred_check
          %p183 = pneg %p87
        $region18: #{tpu_custom_call.1} parent=11 // pred_check_branch
          %185 = sbr.rel (%p183) target = $region20
        $region19: #{tpu_custom_call.1} parent=11 // pred_region
          %s187 = ssub.s32 16, 16
          %188 = vsyncadd [#allocation6], %s187
          %s190 = sshll.u32 [#allocation7], 4
          %s191 = int_to_ptr.vmem [resolvable:$true] %s190
          %193 = dma.hbm_to_vmem [thread:$0]  %s2, 16, %s191, [#allocation6]
        $region20: #{tpu_custom_call.1} parent=11 // pred_fallthru
          _
        // Predicated region
        $region21: #{tpu_custom_call.1} parent=11 // pred_check
          %p194 = pneg %p108
        $region22: #{tpu_custom_call.1} parent=11 // pred_check_branch
          %196 = sbr.rel (%p194) target = $region24
        $region23: #{tpu_custom_call.1} parent=11 // pred_region
          %s198 = ssub.s32 32, 32
          %199 = vsyncadd [#allocation9], %s198
          %s201 = sshll.u32 [#allocation8], 4
          %s202 = int_to_ptr.vmem [resolvable:$true] %s201
          %204 = dma.hbm_to_vmem [thread:$0]  %s3, 32, %s202, [#allocation9]
        $region24: #{tpu_custom_call.1} parent=11 // pred_fallthru
          _
        // Predicated region
        $region25: #{tpu_custom_call.1} parent=11 // pred_check
          %p205 = pneg %p129
        $region26: #{tpu_custom_call.1} parent=11 // pred_check_branch
          %207 = sbr.rel (%p205) target = $region28
        $region27: #{tpu_custom_call.1} parent=11 // pred_region
          %s209 = ssub.s32 16, 16
          %210 = vsyncadd [#allocation9], %s209
          %s212 = sshll.u32 [#allocation10], 4
          %s213 = int_to_ptr.vmem [resolvable:$true] %s212
          %215 = dma.hbm_to_vmem [thread:$0]  %s4, 16, %s213, [#allocation9]
        $region28: #{tpu_custom_call.1} parent=11 // pred_fallthru
          _
      $region12: #{tpu_custom_call.1} parent=5 // pred_fallthru
        _
      %p216 = scmp.lt.s32.totalorder %s19, 2
      // Predicated region
      $region29: #{tpu_custom_call.1} parent=5 // pred_check
        %p217 = pneg %p216
      $region30: #{tpu_custom_call.1} parent=5 // pred_check_branch
        %219 = sbr.rel (%p217) target = $region32
      $region31: #{tpu_custom_call.1} parent=5 // pred_region
        // Predicated region
        $region33: #{tpu_custom_call.1} parent=31 // pred_check
          %p220 = pneg %p39
        $region34: #{tpu_custom_call.1} parent=31 // pred_check_branch
          %222 = sbr.rel (%p220) target = $region36
        $region35: #{tpu_custom_call.1} parent=31 // pred_region
          %s223 = sand.u32 %s29, 1
          %s224 = scalar_lea.sflag [#allocation3], %s223
          %s225 = sand.u32 %s29, 1
          %s226 = smul.addr %s225, 64
          %s227 = scalar_lea.vmem [#allocation2], %s226
          %s229 = ssub.s32 1024, 1024
          %230 = vsyncadd %s224, %s229
          %s231 = smul.addr %s19, 8
          %s232 = smul.addr %s231, 128
          %s233 = scalar_lea.hbm %s0, %s232
          %s234 = sshll.u32 %s227, 4
          %s235 = int_to_ptr.vmem [resolvable:$true] %s234
          %240 = dma.hbm_to_vmem [thread:$0]  %s233, 1024, %s235, %s224, 256, 256, 16
        $region36: #{tpu_custom_call.1} parent=31 // pred_fallthru
          _
      $region32: #{tpu_custom_call.1} parent=5 // pred_fallthru
        _
      %p241 = scmp.le.s32.totalorder 1, %s19
      %p242 = scmp.lt.s32.totalorder %s19, 3
      %p243 = pnand %p241, %p242
      %p244 = pneg %p243
      // Predicated region
      $region37: #{tpu_custom_call.1} parent=5 // pred_check
        _
      $region38: #{tpu_custom_call.1} parent=5 // pred_check_branch
        %246 = sbr.rel (%p243) target = $region40
      $region39: #{tpu_custom_call.1} parent=5 // pred_region
        %s247 = ssub.s32 %s19, 1
        %s248 = sand.u32 %s32, 1
        %s249 = scalar_lea.sflag [#allocation3], %s248
        %s250 = sand.u32 %s32, 1
        %s251 = smul.addr %s250, 64
        %s252 = scalar_lea.vmem [#allocation2], %s251
        // Predicated region
        $region41: #{tpu_custom_call.1} parent=39 // pred_check
          %p253 = pneg %p45
        $region42: #{tpu_custom_call.1} parent=39 // pred_check_branch
          %255 = sbr.rel (%p253) target = $region44
        $region43: #{tpu_custom_call.1} parent=39 // pred_region
          %256 = dma.done %s249, 1024
        $region44: #{tpu_custom_call.1} parent=39 // pred_fallthru
          _
        // Predicated region
        $region45: #{tpu_custom_call.1} parent=39 // pred_check
          %p257 = pneg %p66
        $region46: #{tpu_custom_call.1} parent=39 // pred_check_branch
          %259 = sbr.rel (%p257) target = $region48
        $region47: #{tpu_custom_call.1} parent=39 // pred_region
          %260 = dma.done [#allocation6], 512
        $region48: #{tpu_custom_call.1} parent=39 // pred_fallthru
          _
        // Predicated region
        $region49: #{tpu_custom_call.1} parent=39 // pred_check
          %p261 = pneg %p87
        $region50: #{tpu_custom_call.1} parent=39 // pred_check_branch
          %263 = sbr.rel (%p261) target = $region52
        $region51: #{tpu_custom_call.1} parent=39 // pred_region
          %264 = dma.done [#allocation6], 16
        $region52: #{tpu_custom_call.1} parent=39 // pred_fallthru
          _
        // Predicated region
        $region53: #{tpu_custom_call.1} parent=39 // pred_check
          %p265 = pneg %p108
        $region54: #{tpu_custom_call.1} parent=39 // pred_check_branch
          %267 = sbr.rel (%p265) target = $region56
        $region55: #{tpu_custom_call.1} parent=39 // pred_region
          %268 = dma.done [#allocation9], 32
        $region56: #{tpu_custom_call.1} parent=39 // pred_fallthru
          _
        // Predicated region
        $region57: #{tpu_custom_call.1} parent=39 // pred_check
          %p269 = pneg %p129
        $region58: #{tpu_custom_call.1} parent=39 // pred_check_branch
          %271 = sbr.rel (%p269) target = $region60
        $region59: #{tpu_custom_call.1} parent=39 // pred_region
          %272 = dma.done [#allocation9], 16
        $region60: #{tpu_custom_call.1} parent=39 // pred_fallthru
          _
        %s273 = sand.u32 %s32, 1
        %s274 = scalar_lea.sflag [#allocation3], %s273
        %s275 = sand.u32 %s32, 1
        %s276 = smul.addr %s275, 64
        %s277 = scalar_lea.vmem [#allocation2], %s276
        %p278 = pneg %p45
        %p279 = pneg %p42
        %p280 = pneg %p66
        %p281 = pneg %p63
        %p282 = pneg %p87
        %p283 = pneg %p84
        %p284 = pneg %p108
        %p285 = pneg %p105
        %p286 = pneg %p129
        %p287 = pneg %p126
        %p288 = pneg %p155
        %p289 = pneg %p152
        %s290 = sand.u32 %s142, 1
        %s291 = scalar_lea.sflag [#allocation4], %s290
        %s292 = sand.u32 %s142, 1
        %s293 = smul.addr %s292, 64
        %s294 = scalar_lea.vmem [#allocation11], %s293
        %v295 = vld [vmem:[%s252] sm:$0xff]
        %v296 = vld [vmem:[%s252 + $0x8] sm:$0xff]
        %v297 = vld [vmem:[%s252 + $0x10] sm:$0xff]
        %v298 = vld [vmem:[%s252 + $0x18] sm:$0xff]
        %v299 = vld [vmem:[%s252 + $0x20] sm:$0xff]
        %v300 = vld [vmem:[%s252 + $0x28] sm:$0xff]
        %v301 = vld [vmem:[%s252 + $0x30] sm:$0xff]
        %v302 = vld [vmem:[%s252 + $0x38] sm:$0xff]
        %v303 = vadd.f32 %v295, %v296
        %304 = vadd.xlane.f32.xlu0 %v303
        %v305 = vpop.xlane.xlu0 %304
        %v306 = vadd.f32 %v297, %v298
        %307 = vadd.xlane.f32.xlu0 %v306
        %v308 = vpop.xlane.xlu0 %307
        %v309 = vadd.f32 %v299, %v300
        %310 = vadd.xlane.f32.xlu0 %v309
        %v311 = vpop.xlane.xlu0 %310
        %v312 = vadd.f32 %v301, %v302
        %313 = vadd.xlane.f32.xlu0 %v312
        %v314 = vpop.xlane.xlu0 %313
        %v315 = vmul.f32 %v305, 0.00390625
        %v316 = vmul.f32 %v308, 0.00390625
        %v317 = vmul.f32 %v311, 0.00390625
        %v318 = vmul.f32 %v314, 0.00390625
        %v319 = vld [vmem:[#allocation5] sm:$0xff]
        %v320 = vld [vmem:[#allocation5 + $0x8] sm:$0xff]
        %v321 = vld [vmem:[#allocation5 + $0x10] sm:$0xff]
        %v322 = vld [vmem:[#allocation5 + $0x18] sm:$0xff]
        %v323 = vld [vmem:[#allocation7] sm:$0x1]
        %v328 = vlaneseq
        %v329 = vand.u32 %v328, 127
        %v330 = vlaneseq
        %v331 = vshrl.u32 %v330, 7
        %v332 = vsub.s32 %v329, %v331
        %v333 = vrot.slane %v315, %v332
        %v334 = vadd.s32 %v329, 4294967288
        %v335 = vlaneseq
        %v336 = vshrl.u32 %v335, 7
        %v337 = vsub.s32 %v334, %v336
        %v338 = vrot.slane %v316, %v337
        %vm339 = vcmask 130112
        %v340 = vsel %vm339, %v338, %v333
        %v341 = vadd.s32 %v329, 4294967280
        %v342 = vlaneseq
        %v343 = vshrl.u32 %v342, 7
        %v344 = vsub.s32 %v341, %v343
        %v345 = vrot.slane %v317, %v344
        %vm346 = vcmask 195712
        %v347 = vsel %vm346, %v345, %v340
        %v348 = vadd.s32 %v329, 4294967272
        %v349 = vlaneseq
        %v350 = vshrl.u32 %v349, 7
        %v351 = vsub.s32 %v348, %v350
        %v352 = vrot.slane %v318, %v351
        %vm353 = vcmask 261312
        %v354 = vsel %vm353, %v352, %v347
        %vm355 = vcmask 261120
        %v356 = vsel %vm355, %v354, 0
        %358 = vmatprep.subr.mxu0 0.0
        %359 = vmatpush1.msra.mxu0 %v319
        %360 = vmatprep.subr.mxu0 0.0
        %361 = vmatpush1.msra.mxu0 %v320
        %362 = vmatprep.subr.mxu0 0.0
        %363 = vmatpush1.msra.mxu0 %v321
        %364 = vmatprep.subr.mxu0 0.0
        %365 = vmatpush1.msra.mxu0 %v322
        %366 = vmatprep.subr.mxu0 0.0
        %367 = vmatpush1.msra.mxu0 0.0
        %368 = vmatprep.subr.mxu0 0.0
        %369 = vmatpush1.msra.mxu0 0.0
        %370 = vmatprep.subr.mxu0 0.0
        %371 = vmatpush1.msra.mxu0 0.0
        %372 = vmatprep.subr.mxu0 0.0
        %373 = vmatpush1.msra.mxu0 0.0
        %374 = vmatprep.subr.mxu0 0.0
        %375 = vmatpush1.msra.mxu0 0.0
        %376 = vmatprep.subr.mxu0 0.0
        %377 = vmatpush1.msra.mxu0 0.0
        %378 = vmatprep.subr.mxu0 0.0
        %379 = vmatpush1.msra.mxu0 0.0
        %380 = vmatprep.subr.mxu0 0.0
        %381 = vmatpush1.msra.mxu0 0.0
        %382 = vmatprep.subr.mxu0 0.0
        %383 = vmatpush1.msra.mxu0 0.0
        %384 = vmatprep.subr.mxu0 0.0
        %385 = vmatpush1.msra.mxu0 0.0
        %386 = vmatprep.subr.mxu0 0.0
        %387 = vmatpush1.msra.mxu0 0.0
        %388 = vmatprep.subr.mxu0 0.0
        %389 = vmatpush1.msra.mxu0 0.0
        %390 = vmatprep.subr.mxu0 0.0
        %391 = vmatpush1.msra.mxu0 0.0
        %392 = vmatprep.subr.mxu0 0.0
        %393 = vmatpush1.msra.mxu0 0.0
        %394 = vmatprep.subr.mxu0 0.0
        %395 = vmatpush1.msra.mxu0 0.0
        %396 = vmatprep.subr.mxu0 0.0
        %397 = vmatpush1.msra.mxu0 0.0
        %398 = vmatprep.subr.mxu0 0.0
        %399 = vmatpush1.msra.mxu0 0.0
        %400 = vmatprep.subr.mxu0 0.0
        %401 = vmatpush1.msra.mxu0 0.0
        %402 = vmatprep.subr.mxu0 0.0
        %403 = vmatpush1.msra.mxu0 0.0
        %404 = vmatprep.subr.mxu0 0.0
        %405 = vmatpush1.msra.mxu0 0.0
        %406 = vmatprep.subr.mxu0 0.0
        %407 = vmatpush1.msra.mxu0 0.0
        %408 = vmatprep.subr.mxu0 0.0
        %409 = vmatpush1.msra.mxu0 0.0
        %410 = vmatprep.subr.mxu0 0.0
        %411 = vmatpush1.msra.mxu0 0.0
        %412 = vmatprep.subr.mxu0 0.0
        %413 = vmatpush1.msra.mxu0 0.0
        %414 = vmatprep.subr.mxu0 0.0
        %415 = vmatpush1.msra.mxu0 0.0
        %416 = vmatprep.subr.mxu0 0.0
        %417 = vmatpush1.msra.mxu0 0.0
        %418 = vmatprep.subr.mxu0 0.0
        %419 = vmatpush1.msra.mxu0 0.0
        %420 = vmatprep.subr.mxu0 0.0
        %421 = vmatpush1.msra.mxu0 0.0
        %422 = vmatprep.mubr.f32.mxu0 0.0
        %423 = vmatmul.mubr.f32.gmra.mrb[0].mxu0 %v356
        %v424 = vpop.f32.mrb[0].mxu0
        %v425 = vadd.f32 %v323, %v424
        %v426 = vpop.f32.mrb[0].mxu0
        %427 = vdwg.mxu0
        %v428 = vmax.f32 %v425, 0.0
        %v429 = vld [vmem:[#allocation8] sm:$0x3]
        %v430 = vld [vmem:[#allocation10] sm:$0x1]
        %vm431 = vcmask 15360
        %v433 = vsel %vm431, %v428, 0
        %vm435 = vcmask 1041408
        %v437 = vsel %vm435, %v429, 0
        %439 = vmatprep.subr.mxu0 0.0
        %440 = vmatpush1.msra.mxu0 %v437
        %441 = vmatprep.subr.mxu0 0.0
        %442 = vmatpush1.msra.mxu0 0.0
        %443 = vmatprep.subr.mxu0 0.0
        %444 = vmatpush1.msra.mxu0 0.0
        %445 = vmatprep.subr.mxu0 0.0
        %446 = vmatpush1.msra.mxu0 0.0
        %447 = vmatprep.subr.mxu0 0.0
        %448 = vmatpush1.msra.mxu0 0.0
        %449 = vmatprep.subr.mxu0 0.0
        %450 = vmatpush1.msra.mxu0 0.0
        %451 = vmatprep.subr.mxu0 0.0
        %452 = vmatpush1.msra.mxu0 0.0
        %453 = vmatprep.subr.mxu0 0.0
        %454 = vmatpush1.msra.mxu0 0.0
        %455 = vmatprep.subr.mxu0 0.0
        %456 = vmatpush1.msra.mxu0 0.0
        %457 = vmatprep.subr.mxu0 0.0
        %458 = vmatpush1.msra.mxu0 0.0
        %459 = vmatprep.subr.mxu0 0.0
        %460 = vmatpush1.msra.mxu0 0.0
        %461 = vmatprep.subr.mxu0 0.0
        %462 = vmatpush1.msra.mxu0 0.0
        %463 = vmatprep.subr.mxu0 0.0
        %464 = vmatpush1.msra.mxu0 0.0
        %465 = vmatprep.subr.mxu0 0.0
        %466 = vmatpush1.msra.mxu0 0.0
        %467 = vmatprep.subr.mxu0 0.0
        %468 = vmatpush1.msra.mxu0 0.0
        %469 = vmatprep.subr.mxu0 0.0
        %470 = vmatpush1.msra.mxu0 0.0
        %471 = vmatprep.subr.mxu0 0.0
        %472 = vmatpush1.msra.mxu0 0.0
        %473 = vmatprep.subr.mxu0 0.0
        %474 = vmatpush1.msra.mxu0 0.0
        %475 = vmatprep.subr.mxu0 0.0
        %476 = vmatpush1.msra.mxu0 0.0
        %477 = vmatprep.subr.mxu0 0.0
        %478 = vmatpush1.msra.mxu0 0.0
        %479 = vmatprep.subr.mxu0 0.0
        %480 = vmatpush1.msra.mxu0 0.0
        %481 = vmatprep.subr.mxu0 0.0
        %482 = vmatpush1.msra.mxu0 0.0
        %483 = vmatprep.subr.mxu0 0.0
        %484 = vmatpush1.msra.mxu0 0.0
        %485 = vmatprep.subr.mxu0 0.0
        %486 = vmatpush1.msra.mxu0 0.0
        %487 = vmatprep.subr.mxu0 0.0
        %488 = vmatpush1.msra.mxu0 0.0
        %489 = vmatprep.subr.mxu0 0.0
        %490 = vmatpush1.msra.mxu0 0.0
        %491 = vmatprep.subr.mxu0 0.0
        %492 = vmatpush1.msra.mxu0 0.0
        %493 = vmatprep.subr.mxu0 0.0
        %494 = vmatpush1.msra.mxu0 0.0
        %495 = vmatprep.subr.mxu0 0.0
        %496 = vmatpush1.msra.mxu0 0.0
        %497 = vmatprep.subr.mxu0 0.0
        %498 = vmatpush1.msra.mxu0 0.0
        %499 = vmatprep.subr.mxu0 0.0
        %500 = vmatpush1.msra.mxu0 0.0
        %501 = vmatprep.subr.mxu0 0.0
        %502 = vmatpush1.msra.mxu0 0.0
        %503 = vmatprep.mubr.f32.mxu0 0.0
        %504 = vmatmul.mubr.f32.gmra.mrb[0].mxu0 %v433
        %v505 = vpop.f32.mrb[0].mxu0
        %v506 = vadd.f32 %v430, %v505
        %v507 = vpop.f32.mrb[0].mxu0
        %508 = vdwg.mxu0
        %v509 = vxor.u32 %v506, 2147483648
        %v510 = vmul.f32 %v509, 1.442695
        %v511 = vpow.pop %v510
        %v512 = vadd.f32 %v511, 1.0
        %v513 = vrcp.pop %v512
        %v514 = vmul.f32 1.0, %v513
        %v515 = vlaneseq
        %v516 = vshrl.u32 %v515, 7
        %v517 = vsub.s32 0, %v516
        %v518 = vrot.slane %v514, %v517
        %520 = vbcast.lane.b32.xlu0 %v518, 256
        %v521 = vpop.permute.xlu0 %520
        %s523 = sor.u32 256, 8
        %524 = vbcast.lane.b32.xlu0 %v518, %s523
        %v525 = vpop.permute.xlu0 %524
        %s527 = sor.u32 256, 16
        %528 = vbcast.lane.b32.xlu0 %v518, %s527
        %v529 = vpop.permute.xlu0 %528
        %s531 = sor.u32 256, 24
        %532 = vbcast.lane.b32.xlu0 %v518, %s531
        %v533 = vpop.permute.xlu0 %532
        %v534 = vmul.f32 %v295, %v521
        %v535 = vmul.f32 %v296, %v521
        %v536 = vmul.f32 %v297, %v525
        %v537 = vmul.f32 %v298, %v525
        %v538 = vmul.f32 %v299, %v529
        %v539 = vmul.f32 %v300, %v529
        %v540 = vmul.f32 %v301, %v533
        %v541 = vmul.f32 %v302, %v533
        %542 = vst [vmem:[%s294] sm:$0xff] %v534
        %543 = vst [vmem:[%s294 + $0x8] sm:$0xff] %v535
        %544 = vst [vmem:[%s294 + $0x10] sm:$0xff] %v536
        %545 = vst [vmem:[%s294 + $0x18] sm:$0xff] %v537
        %546 = vst [vmem:[%s294 + $0x20] sm:$0xff] %v538
        %547 = vst [vmem:[%s294 + $0x28] sm:$0xff] %v539
        %548 = vst [vmem:[%s294 + $0x30] sm:$0xff] %v540
        %549 = vst [vmem:[%s294 + $0x38] sm:$0xff] %v541
        %s550 = sand.u32 %s142, 1
        %s551 = scalar_lea.sflag [#allocation4], %s550
        %s552 = sand.u32 %s142, 1
        %s553 = smul.addr %s552, 64
        %s554 = scalar_lea.vmem [#allocation11], %s553
        // Predicated region
        $region61: #{tpu_custom_call.1} parent=39 // pred_check
          %p555 = pneg %p152
        $region62: #{tpu_custom_call.1} parent=39 // pred_check_branch
          %557 = sbr.rel (%p555) target = $region64
        $region63: #{tpu_custom_call.1} parent=39 // pred_region
          %s559 = ssub.s32 1024, 1024
          %560 = vsyncadd %s551, %s559
          %s561 = smul.addr %s24, 8
          %s562 = smul.addr %s561, 128
          %s563 = scalar_lea.hbm %s5, %s562
          %s564 = sshll.u32 %s554, 4
          %s565 = int_to_ptr.vmem [resolvable:$true] %s564
          %570 = dma.vmem_to_hbm [thread:$0]  %s565, 1024, %s563, %s551, 256, 256, 16
        $region64: #{tpu_custom_call.1} parent=39 // pred_fallthru
          _
      $region40: #{tpu_custom_call.1} parent=5 // pred_fallthru
        _
      %p571 = scmp.le.s32.totalorder 2, %s19
      // Predicated region
      $region65: #{tpu_custom_call.1} parent=5 // pred_check
        %p572 = pneg %p571
      $region66: #{tpu_custom_call.1} parent=5 // pred_check_branch
        %574 = sbr.rel (%p572) target = $region68
      $region67: #{tpu_custom_call.1} parent=5 // pred_region
        %s575 = ssub.s32 %s19, 2
        // Predicated region
        $region69: #{tpu_custom_call.1} parent=67 // pred_check
          %p576 = pneg %p158
        $region70: #{tpu_custom_call.1} parent=67 // pred_check_branch
          %578 = sbr.rel (%p576) target = $region72
        $region71: #{tpu_custom_call.1} parent=67 // pred_region
          %s579 = sand.u32 %s143, 1
          %s580 = scalar_lea.sflag [#allocation4], %s579
          %s581 = sand.u32 %s143, 1
          %s582 = smul.addr %s581, 64
          %s583 = scalar_lea.vmem [#allocation11], %s582
          %584 = dma.done %s580, 1024
        $region72: #{tpu_custom_call.1} parent=67 // pred_fallthru
          _
      $region68: #{tpu_custom_call.1} parent=5 // pred_fallthru
        _
    $region6: #{tpu_custom_call.1} parent=1 // loop_footer
      %s23 = sadd.s32 1, %s19
    $region7: #{tpu_custom_call.1} parent=1 // loop_footer_branch
      %18 = sbr.rel target = $region3
    $region8: #{tpu_custom_call.1} parent=1 // loop_exit
      _
    %585 = vsyncpa [#allocation3], 1
    %s586 = scalar_lea.sflag [#allocation3], 1
    %587 = vsyncpa %s586, 1
    %588 = vsyncpa [#allocation6], 1
    %589 = vsyncpa [#allocation9], 1
    %590 = vsyncpa [#allocation4], 1
    %s591 = scalar_lea.sflag [#allocation4], 1
    %592 = vsyncpa %s591, 1

</llo_original>
